<compile_context>
chip_gen: v7x
topology: tpu7x:2x2x1
jax: 0.10.0
libtpu: 0.0.40
codegen_flags: <defaults>
</compile_context>

<pallas_src>
import numpy as np
import jax
import jax.numpy as jnp
from jax.experimental import pallas as pl
from jax.experimental.pallas import tpu as pltpu

LANES = 128
NCORES = 2            # leading "parallel" grid axis (megacore split on v7x)
MAX_TILE_ROWS = 512   # rows (of 128 lanes) processed per grid step


def _focal_kernel(pred_ref, gt_ref, out_ref, acc_pos, acc_neg, acc_npos):
    # pred_ref, gt_ref : (tm, 128) f32 tiles of the flattened heatmaps
    # out_ref          : (24, 128) f32 per-core partials (leading dim squeezed)
    #                    rows 0:8  -> pos_loss, 8:16 -> neg_loss, 16:24 -> num_pos
    # acc_*            : (8, 128) f32 VMEM vector accumulators (per core)
    step = pl.program_id(1)

    @pl.when(step == 0)
    def _():
        acc_pos[...] = jnp.zeros_like(acc_pos)
        acc_neg[...] = jnp.zeros_like(acc_neg)
        acc_npos[...] = jnp.zeros_like(acc_npos)

    pred = pred_ref[...]
    gt = gt_ref[...]

    pos_inds = (gt == 1.0).astype(jnp.float32)
    neg_inds = (gt < 1.0).astype(jnp.float32)
    one_m_gt = 1.0 - gt
    neg_w2 = one_m_gt * one_m_gt
    neg_weights = neg_w2 * neg_w2                      # (1 - gt)^4
    one_m_pred = 1.0 - pred

    pos_loss = jnp.log(pred) * (one_m_pred * one_m_pred) * pos_inds
    neg_loss = jnp.log(one_m_pred) * (pred * pred) * neg_weights * neg_inds

    def _fold(x):                                      # (tm,128) -> (8,128)
        return jnp.sum(x.reshape(x.shape[0] // 8, 8, LANES), axis=0)

    acc_pos[...] += _fold(pos_loss)
    acc_neg[...] += _fold(neg_loss)
    acc_npos[...] += _fold(pos_inds)

    @pl.when(step == pl.num_programs(1) - 1)
    def _():
        out_ref[0:8, :] = acc_pos[...]
        out_ref[8:16, :] = acc_neg[...]
        out_ref[16:24, :] = acc_npos[...]


def _round_up(a, b):
    return -(-a // b) * b


def focal_loss(pred, gt, weight=1.0):
    """CornerNet modified focal loss; matches FocalLoss.forward(out, target)."""
    pred = pred.astype(jnp.float32).reshape(-1)
    gt = gt.astype(jnp.float32).reshape(-1)
    total = pred.shape[0]

    rows = -(-total // LANES)                         # 128-lane rows needed
    rows_per_core = _round_up(-(-rows // NCORES), 8)  # multiple of 8 sublanes
    tm = min(MAX_TILE_ROWS, rows_per_core)            # tile rows (multiple of 8)
    rows_per_core = _round_up(rows_per_core, tm)
    padded_rows = NCORES * rows_per_core
    steps_per_core = rows_per_core // tm

    pad = padded_rows * LANES - total
    # Padding contributes exactly zero: gt=2 -> pos_inds=0 and neg_inds=0,
    # pred=0.5 keeps log() finite.
    pred2 = jnp.pad(pred, (0, pad), constant_values=0.5).reshape(padded_rows, LANES)
    gt2 = jnp.pad(gt, (0, pad), constant_values=2.0).reshape(padded_rows, LANES)

    part = pl.pallas_call(
        _focal_kernel,
        out_shape=jax.ShapeDtypeStruct((NCORES, 24, LANES), jnp.float32),
        grid_spec=pltpu.PrefetchScalarGridSpec(
            num_scalar_prefetch=0,
            grid=(NCORES, steps_per_core),
            in_specs=[
                pl.BlockSpec((tm, LANES),
                             lambda c, i: (c * steps_per_core + i, 0)),
                pl.BlockSpec((tm, LANES),
                             lambda c, i: (c * steps_per_core + i, 0)),
            ],
            out_specs=pl.BlockSpec((None, 24, LANES), lambda c, i: (c, 0, 0)),
            scratch_shapes=[pltpu.VMEM((8, LANES), jnp.float32)] * 3,
        ),
        compiler_params=pltpu.CompilerParams(
            dimension_semantics=("parallel", "arbitrary")),
    )(pred2, gt2)

    pos_sum = jnp.sum(part[:, 0:8, :])
    neg_sum = jnp.sum(part[:, 8:16, :])
    num_pos = jnp.sum(part[:, 16:24, :])

    # Data-dependent `if num_pos == 0` branch of the PyTorch code, done as a
    # select in the tiny JAX epilogue (both branches are cheap scalars).
    safe_den = jnp.where(num_pos > 0, num_pos, 1.0)
    loss = jnp.where(num_pos > 0, -(pos_sum + neg_sum) / safe_den, -neg_sum)
    return loss * weight


def _reference(pred, gt, weight=1.0):
    # Pure-JAX mirror of the PyTorch forward.
    pred = pred.astype(jnp.float32)
    gt = gt.astype(jnp.float32)
    pos_inds = (gt == 1.0).astype(jnp.float32)
    neg_inds = (gt < 1.0).astype(jnp.float32)
    neg_weights = (1.0 - gt) ** 4
    pos_loss = jnp.log(pred) * (1.0 - pred) ** 2 * pos_inds
    neg_loss = jnp.log(1.0 - pred) * pred ** 2 * neg_weights * neg_inds
    num_pos = jnp.sum(pos_inds)
    pos_loss = jnp.sum(pos_loss)
    neg_loss = jnp.sum(neg_loss)
    loss = jnp.where(num_pos == 0, -neg_loss,
                     -(pos_loss + neg_loss) / jnp.where(num_pos == 0, 1.0, num_pos))
    return loss * weight


if __name__ == "__main__":
    key = jax.random.PRNGKey(0)
    k1, k2, k3 = jax.random.split(key, 3)

    N, C, H, W = 2, 4, 16, 16
    # pred: heatmap probabilities (CenterNet clamped sigmoid) in (0, 1).
    pred = jnp.clip(jax.nn.sigmoid(jax.random.normal(k1, (N, C, H, W), jnp.float32)),
                    1e-4, 1.0 - 1e-4)
    # gt: Gaussian-splatted heatmap in [0, 1) with a few exact-1.0 peaks.
    gt = jax.random.uniform(k2, (N, C, H, W), jnp.float32) * 0.98
    peaks = jax.random.uniform(k3, (N, C, H, W)) > 0.97
    gt = jnp.where(peaks, 1.0, gt)

    loss = focal_loss(pred, gt, weight=1.0)
    loss = jax.block_until_ready(loss)

    ref = _reference(pred, gt, weight=1.0)
    assert np.allclose(np.asarray(loss), np.asarray(ref), rtol=1e-4, atol=1e-4), (
        float(loss), float(ref))

    print("KERNEL_OK")
</pallas_src>

<mosaic_0001>
module attributes {stable_mosaic.version = 11 : i64} {
  func.func @_focal_kernel(%arg0: i32, %arg1: i32, %arg2: memref<8x128xf32, #tpu.memory_space<vmem>>, %arg3: memref<8x128xf32, #tpu.memory_space<vmem>>, %arg4: memref<1x24x128xf32, #tpu.memory_space<vmem>>, %arg5: memref<8x128xf32, #tpu.memory_space<vmem>>, %arg6: memref<8x128xf32, #tpu.memory_space<vmem>>, %arg7: memref<8x128xf32, #tpu.memory_space<vmem>>) attributes {dimension_semantics = [#tpu.dimension_semantics<parallel>, #tpu.dimension_semantics<arbitrary>], iteration_bounds = array<i64: 2, 1>, scalar_prefetch = 0 : i64, scratch_operands = 3 : i64, tpu.core_type = #tpu.core_type<tc>, window_params = [{transform_indices = @transform_0, window_bounds = array<i64: 8, 128>}, {transform_indices = @transform_1, window_bounds = array<i64: 8, 128>}, {transform_indices = @transform_2, window_bounds = array<i64: 1, 24, 128>}]} {
    %c0_i32 = arith.constant 0 : i32
    %0 = arith.cmpi eq, %arg1, %c0_i32 : i32
    %1 = arith.extui %0 : i1 to i32
    %c0_i32_0 = arith.constant 0 : i32
    %2 = arith.cmpi ne, %1, %c0_i32_0 : i32
    scf.if %2 {
      %cst_24 = arith.constant 0.000000e+00 : f32
      %46 = vector.broadcast %cst_24 : f32 to vector<8x128xf32>
      %c0_25 = arith.constant 0 : index
      %c0_26 = arith.constant 0 : index
      %47 = vector.load %arg5[%c0_25, %c0_26] : memref<8x128xf32, #tpu.memory_space<vmem>>, vector<8x128xf32>
      tpu.vector_store %arg5[%c0_25, %c0_26], %46 {strides = array<i32>} : memref<8x128xf32, #tpu.memory_space<vmem>>, vector<8x128xf32>,
      %cst_27 = arith.constant 0.000000e+00 : f32
      %48 = vector.broadcast %cst_27 : f32 to vector<8x128xf32>
      %c0_28 = arith.constant 0 : index
      %c0_29 = arith.constant 0 : index
      %49 = vector.load %arg6[%c0_28, %c0_29] : memref<8x128xf32, #tpu.memory_space<vmem>>, vector<8x128xf32>
      tpu.vector_store %arg6[%c0_28, %c0_29], %48 {strides = array<i32>} : memref<8x128xf32, #tpu.memory_space<vmem>>, vector<8x128xf32>,
      %cst_30 = arith.constant 0.000000e+00 : f32
      %50 = vector.broadcast %cst_30 : f32 to vector<8x128xf32>
      %c0_31 = arith.constant 0 : index
      %c0_32 = arith.constant 0 : index
      %51 = vector.load %arg7[%c0_31, %c0_32] : memref<8x128xf32, #tpu.memory_space<vmem>>, vector<8x128xf32>
      tpu.vector_store %arg7[%c0_31, %c0_32], %50 {strides = array<i32>} : memref<8x128xf32, #tpu.memory_space<vmem>>, vector<8x128xf32>,
    } else {
    }
    %c0 = arith.constant 0 : index
    %c0_1 = arith.constant 0 : index
    %3 = vector.load %arg2[%c0, %c0_1] : memref<8x128xf32, #tpu.memory_space<vmem>>, vector<8x128xf32>
    %c0_2 = arith.constant 0 : index
    %c0_3 = arith.constant 0 : index
    %4 = vector.load %arg3[%c0_2, %c0_3] : memref<8x128xf32, #tpu.memory_space<vmem>>, vector<8x128xf32>
    %cst = arith.constant 1.000000e+00 : f32
    %5 = vector.broadcast %cst : f32 to vector<8x128xf32>
    %6 = arith.cmpf oeq, %4, %5 : vector<8x128xf32>
    %7 = arith.extui %6 : vector<8x128xi1> to vector<8x128xi32>
    %8 = arith.sitofp %7 : vector<8x128xi32> to vector<8x128xf32>
    %cst_4 = arith.constant 1.000000e+00 : f32
    %9 = vector.broadcast %cst_4 : f32 to vector<8x128xf32>
    %10 = arith.cmpf olt, %4, %9 : vector<8x128xf32>
    %11 = arith.extui %10 : vector<8x128xi1> to vector<8x128xi32>
    %12 = arith.sitofp %11 : vector<8x128xi32> to vector<8x128xf32>
    %cst_5 = arith.constant 1.000000e+00 : f32
    %13 = vector.broadcast %cst_5 : f32 to vector<8x128xf32>
    %14 = arith.subf %13, %4 : vector<8x128xf32>
    %15 = arith.mulf %14, %14 : vector<8x128xf32>
    %16 = arith.mulf %15, %15 : vector<8x128xf32>
    %cst_6 = arith.constant 1.000000e+00 : f32
    %17 = vector.broadcast %cst_6 : f32 to vector<8x128xf32>
    %18 = arith.subf %17, %3 : vector<8x128xf32>
    %19 = math.log %3 : vector<8x128xf32>
    %20 = arith.mulf %18, %18 : vector<8x128xf32>
    %21 = arith.mulf %19, %20 : vector<8x128xf32>
    %22 = arith.mulf %21, %8 : vector<8x128xf32>
    %23 = math.log %18 : vector<8x128xf32>
    %24 = arith.mulf %3, %3 : vector<8x128xf32>
    %25 = arith.mulf %23, %24 : vector<8x128xf32>
    %26 = arith.mulf %25, %16 : vector<8x128xf32>
    %27 = arith.mulf %26, %12 : vector<8x128xf32>
    %c0_7 = arith.constant 0 : index
    %c0_8 = arith.constant 0 : index
    %28 = vector.load %arg5[%c0_7, %c0_8] : memref<8x128xf32, #tpu.memory_space<vmem>>, vector<8x128xf32>
    %29 = vector.shape_cast %22 : vector<8x128xf32> to vector<1x8x128xf32>
    %cst_9 = arith.constant dense<0.000000e+00> : vector<8x128xf32>
    %30 = vector.multi_reduction <add>, %29, %cst_9 [0] : vector<1x8x128xf32> to vector<8x128xf32>
    %31 = arith.addf %28, %30 : vector<8x128xf32>
    %c0_10 = arith.constant 0 : index
    %c0_11 = arith.constant 0 : index
    %32 = vector.load %arg5[%c0_10, %c0_11] : memref<8x128xf32, #tpu.memory_space<vmem>>, vector<8x128xf32>
    tpu.vector_store %arg5[%c0_10, %c0_11], %31 {strides = array<i32>} : memref<8x128xf32, #tpu.memory_space<vmem>>, vector<8x128xf32>,
    %c0_12 = arith.constant 0 : index
    %c0_13 = arith.constant 0 : index
    %33 = vector.load %arg6[%c0_12, %c0_13] : memref<8x128xf32, #tpu.memory_space<vmem>>, vector<8x128xf32>
    %34 = vector.shape_cast %27 : vector<8x128xf32> to vector<1x8x128xf32>
    %cst_14 = arith.constant dense<0.000000e+00> : vector<8x128xf32>
    %35 = vector.multi_reduction <add>, %34, %cst_14 [0] : vector<1x8x128xf32> to vector<8x128xf32>
    %36 = arith.addf %33, %35 : vector<8x128xf32>
    %c0_15 = arith.constant 0 : index
    %c0_16 = arith.constant 0 : index
    %37 = vector.load %arg6[%c0_15, %c0_16] : memref<8x128xf32, #tpu.memory_space<vmem>>, vector<8x128xf32>
    tpu.vector_store %arg6[%c0_15, %c0_16], %36 {strides = array<i32>} : memref<8x128xf32, #tpu.memory_space<vmem>>, vector<8x128xf32>,
    %c0_17 = arith.constant 0 : index
    %c0_18 = arith.constant 0 : index
    %38 = vector.load %arg7[%c0_17, %c0_18] : memref<8x128xf32, #tpu.memory_space<vmem>>, vector<8x128xf32>
    %39 = vector.shape_cast %8 : vector<8x128xf32> to vector<1x8x128xf32>
    %cst_19 = arith.constant dense<0.000000e+00> : vector<8x128xf32>
    %40 = vector.multi_reduction <add>, %39, %cst_19 [0] : vector<1x8x128xf32> to vector<8x128xf32>
    %41 = arith.addf %38, %40 : vector<8x128xf32>
    %c0_20 = arith.constant 0 : index
    %c0_21 = arith.constant 0 : index
    %42 = vector.load %arg7[%c0_20, %c0_21] : memref<8x128xf32, #tpu.memory_space<vmem>>, vector<8x128xf32>
    tpu.vector_store %arg7[%c0_20, %c0_21], %41 {strides = array<i32>} : memref<8x128xf32, #tpu.memory_space<vmem>>, vector<8x128xf32>,
    %c0_i32_22 = arith.constant 0 : i32
    %43 = arith.cmpi eq, %arg1, %c0_i32_22 : i32
    %44 = arith.extui %43 : i1 to i32
    %c0_i32_23 = arith.constant 0 : i32
    %45 = arith.cmpi ne, %44, %c0_i32_23 : i32
    scf.if %45 {
      %c0_24 = arith.constant 0 : index
      %c0_25 = arith.constant 0 : index
      %46 = vector.load %arg5[%c0_24, %c0_25] : memref<8x128xf32, #tpu.memory_space<vmem>>, vector<8x128xf32>
      %c0_26 = arith.constant 0 : index
      %c0_27 = arith.constant 0 : index
      %c0_28 = arith.constant 0 : index
      %47 = vector.load %arg4[%c0_26, %c0_27, %c0_28] : memref<1x24x128xf32, #tpu.memory_space<vmem>>, vector<1x8x128xf32>
      %48 = vector.shape_cast %47 : vector<1x8x128xf32> to vector<8x128xf32>
      %49 = vector.shape_cast %46 : vector<8x128xf32> to vector<1x8x128xf32>
      tpu.vector_store %arg4[%c0_26, %c0_27, %c0_28], %49 {strides = array<i32>} : memref<1x24x128xf32, #tpu.memory_space<vmem>>, vector<1x8x128xf32>,
      %c0_29 = arith.constant 0 : index
      %c0_30 = arith.constant 0 : index
      %50 = vector.load %arg6[%c0_29, %c0_30] : memref<8x128xf32, #tpu.memory_space<vmem>>, vector<8x128xf32>
      %c0_31 = arith.constant 0 : index
      %c8 = arith.constant 8 : index
      %c0_32 = arith.constant 0 : index
      %51 = vector.load %arg4[%c0_31, %c8, %c0_32] : memref<1x24x128xf32, #tpu.memory_space<vmem>>, vector<1x8x128xf32>
      %52 = vector.shape_cast %51 : vector<1x8x128xf32> to vector<8x128xf32>
      %53 = vector.shape_cast %50 : vector<8x128xf32> to vector<1x8x128xf32>
      tpu.vector_store %arg4[%c0_31, %c8, %c0_32], %53 {strides = array<i32>} : memref<1x24x128xf32, #tpu.memory_space<vmem>>, vector<1x8x128xf32>,
      %c0_33 = arith.constant 0 : index
      %c0_34 = arith.constant 0 : index
      %54 = vector.load %arg7[%c0_33, %c0_34] : memref<8x128xf32, #tpu.memory_space<vmem>>, vector<8x128xf32>
      %c0_35 = arith.constant 0 : index
      %c16 = arith.constant 16 : index
      %c0_36 = arith.constant 0 : index
      %55 = vector.load %arg4[%c0_35, %c16, %c0_36] : memref<1x24x128xf32, #tpu.memory_space<vmem>>, vector<1x8x128xf32>
      %56 = vector.shape_cast %55 : vector<1x8x128xf32> to vector<8x128xf32>
      %57 = vector.shape_cast %54 : vector<8x128xf32> to vector<1x8x128xf32>
      tpu.vector_store %arg4[%c0_35, %c16, %c0_36], %57 {strides = array<i32>} : memref<1x24x128xf32, #tpu.memory_space<vmem>>, vector<1x8x128xf32>,
    } else {
    }
    return
  }
  func.func @transform_0(%arg0: i32, %arg1: i32) -> (i32, i32) {
    %c1_i32 = arith.constant 1 : i32
    %0 = arith.muli %arg0, %c1_i32 : i32
    %1 = arith.addi %0, %arg1 : i32
    %c0_i32 = arith.constant 0 : i32
    %c0_i32_0 = arith.constant 0 : i32
    return %1, %c0_i32 : i32, i32
  }
  func.func @transform_1(%arg0: i32, %arg1: i32) -> (i32, i32) {
    %c1_i32 = arith.constant 1 : i32
    %0 = arith.muli %arg0, %c1_i32 : i32
    %1 = arith.addi %0, %arg1 : i32
    %c0_i32 = arith.constant 0 : i32
    %c0_i32_0 = arith.constant 0 : i32
    return %1, %c0_i32 : i32, i32
  }
  func.func @transform_2(%arg0: i32, %arg1: i32) -> (i32, i32, i32) {
    %c0_i32 = arith.constant 0 : i32
    %c0_i32_0 = arith.constant 0 : i32
    %c0_i32_1 = arith.constant 0 : i32
    return %arg0, %c0_i32, %c0_i32_0 : i32, i32, i32
  }
}

</mosaic_0001>

<llo_original>
// kernel: tpu_custom_call.1
$region0: #{tpu_custom_call.1}
  #allocation0 [shape = 'u32[]', space=smem, size = 0x4, offset = 0x4, fixed_abs, tag = 'smem constant byte address 0x4 - core index']
  #allocation1 [shape = 'u32[144,128]{1,0:T(1,128)}', space=vmem, size = 0x12000, scoped, tag = 'internal scratch']
  #allocation2 [shape = 'f32[8,128]{1,0:T(8,128)}', space=vmem, size = 0x1000, scoped, tag = 'scratch operand']
  #allocation3 [shape = 'f32[8,128]{1,0:T(8,128)}', space=vmem, size = 0x1000, scoped, tag = 'scratch operand']
  #allocation4 [shape = 'f32[8,128]{1,0:T(8,128)}', space=vmem, size = 0x1000, scoped, tag = 'scratch operand']
  %s0 = inlined_call_operand.hbm [shape: f32[16,128], index: 0, kind: input, shape index: {}]
  %s1 = inlined_call_operand.hbm [shape: f32[16,128], index: 1, kind: input, shape index: {}]
  %s2 = inlined_call_operand.hbm [shape: f32[2,24,128], index: 2, kind: output, shape index: {}]
  %s3 = sld [smem:[#allocation0]]
  $region57: #{tpu_custom_call.1} parent=0
    _
  %s5 = ssub.s32 1, %s3
  %s6 = scalar_select 0, %s5, %s3
  $region1: #{tpu_custom_call.1} parent=0
    #allocation5 [shape = 'u8[8192]{0}', space=vmem, size = 0x2000, scoped, tag = 'input window, operand 0']
    #allocation6 [shape = 's32[2]{0}', space=sflag, size = 0x8, scoped, tag = 'scoped memory for tpu_custom_call.1']
    #allocation7 [shape = 's32[2]{0}', space=sflag, size = 0x8, scoped, tag = 'scoped memory for tpu_custom_call.1']
    #allocation8 [shape = 'u8[8192]{0}', space=vmem, size = 0x2000, scoped, tag = 'input window, operand 1']
    #allocation9 [shape = 's32[2]{0}', space=sflag, size = 0x8, scoped, tag = 'scoped memory for tpu_custom_call.1']
    #allocation10 [shape = 'u8[24576]{0}', space=vmem, size = 0x6000, scoped, tag = 'output window, operand 0']
    %7 = vsyncpa [#allocation6], 0
    %s8 = scalar_lea.sflag [#allocation6], 1
    %9 = vsyncpa %s8, 0
    %10 = vsyncpa [#allocation9], 0
    %s11 = scalar_lea.sflag [#allocation9], 1
    %12 = vsyncpa %s11, 0
    %13 = vsyncpa [#allocation7], 0
    %s14 = scalar_lea.sflag [#allocation7], 1
    %15 = vsyncpa %s14, 0
    loop: start=0, step=1, limit=4
    $region2: #{tpu_custom_call.1} parent=1 // loop_pre_header
      _
    $region3: #{tpu_custom_call.1} parent=1 // loop_header
      %s17 = sphi 0, %s21
      %p18 = scmp.ge.s32.totalorder %s17, 4
      %s24 = sphi 0, %s36
      %s25 = sphi 0, %s32
      %s26 = sphi 0, %s24
      %s27 = sphi 0, %s25
      %s28 = sphi 0, %s26
      %s29 = sphi 0, %s27
      %s41 = sphi 0, %s43
      %s44 = sphi 0, %s41
      %s45 = sphi 0, %s44
      %s61 = sphi 0, %s45
      %s69 = sphi 0, %s71
      %s72 = sphi 0, %s69
      %s73 = sphi 0, %s72
      %s89 = sphi 0, %s73
      %s95 = sphi 0, %s97
      %s98 = sphi 0, %s95
      %s99 = sphi 0, %s98
      %s115 = sphi 0, %s99
    $region4: #{tpu_custom_call.1} parent=1 // loop_header_branch
      %20 = sbr.rel (%p18) target = $region8
    $region5: #{tpu_custom_call.1} parent=1 // loop_body
      %s22 = ssub.s32 %s17, 1
      %s23 = ssub.s32 %s17, 2
      %s30 = sadd.s32 1, %s25
      %p31 = scmp.ge.s32.totalorder %s30, 1
      %s32 = scalar_select %p31, 0, %s30
      %s33 = sadd.s32 1, %s24
      %s34 = scalar_select %p31, %s33, %s24
      %p35 = scmp.ge.s32.totalorder %s34, 2
      %s36 = scalar_select %p35, 0, %s34
      %s37 = sadd.s32 %s24, %s25
      %s38 = sadd.s32 %s36, %s32
      %s39 = ssub.s32 %s37, %s38
      %p40 = scmp.eq.s32.totalorder %s39, 0
      %s42 = sadd.s32 %s41, 1
      %s43 = scalar_select %p40, %s41, %s42
      %p46 = pneg %p40
      %p47 = scmp.eq.s32.totalorder %s17, 1
      %p48 = por %p46, %p47
      %p49 = scmp.ne.s32.totalorder %s41, %s44
      %p50 = scmp.eq.s32.totalorder %s17, 0
      %p51 = por %p49, %p50
      %p52 = scmp.ne.s32.totalorder %s41, %s44
      %p53 = scmp.eq.s32.totalorder %s22, 1
      %p54 = por %p52, %p53
      %p55 = scmp.ne.s32.totalorder %s44, %s45
      %p56 = scmp.eq.s32.totalorder %s22, 0
      %p57 = por %p55, %p56
      %p58 = scmp.ne.s32.totalorder %s44, %s45
      %p59 = scmp.eq.s32.totalorder %s23, 1
      %p60 = por %p58, %p59
      %p62 = scmp.ne.s32.totalorder %s45, %s61
      %p63 = scmp.eq.s32.totalorder %s23, 0
      %p64 = por %p62, %p63
      %s65 = sadd.s32 %s24, %s25
      %s66 = sadd.s32 %s36, %s32
      %s67 = ssub.s32 %s65, %s66
      %p68 = scmp.eq.s32.totalorder %s67, 0
      %s70 = sadd.s32 %s69, 1
      %s71 = scalar_select %p68, %s69, %s70
      %p74 = pneg %p68
      %p75 = scmp.eq.s32.totalorder %s17, 1
      %p76 = por %p74, %p75
      %p77 = scmp.ne.s32.totalorder %s69, %s72
      %p78 = scmp.eq.s32.totalorder %s17, 0
      %p79 = por %p77, %p78
      %p80 = scmp.ne.s32.totalorder %s69, %s72
      %p81 = scmp.eq.s32.totalorder %s22, 1
      %p82 = por %p80, %p81
      %p83 = scmp.ne.s32.totalorder %s72, %s73
      %p84 = scmp.eq.s32.totalorder %s22, 0
      %p85 = por %p83, %p84
      %p86 = scmp.ne.s32.totalorder %s72, %s73
      %p87 = scmp.eq.s32.totalorder %s23, 1
      %p88 = por %p86, %p87
      %p90 = scmp.ne.s32.totalorder %s73, %s89
      %p91 = scmp.eq.s32.totalorder %s23, 0
      %p92 = por %p90, %p91
      %s93 = ssub.s32 %s24, %s36
      %p94 = scmp.eq.s32.totalorder %s93, 0
      %s96 = sadd.s32 %s95, 1
      %s97 = scalar_select %p94, %s95, %s96
      %p100 = pneg %p94
      %p101 = scmp.eq.s32.totalorder %s17, 1
      %p102 = por %p100, %p101
      %p103 = scmp.ne.s32.totalorder %s95, %s98
      %p104 = scmp.eq.s32.totalorder %s17, 0
      %p105 = por %p103, %p104
      %p106 = scmp.ne.s32.totalorder %s95, %s98
      %p107 = scmp.eq.s32.totalorder %s22, 1
      %p108 = por %p106, %p107
      %p109 = scmp.ne.s32.totalorder %s98, %s99
      %p110 = scmp.eq.s32.totalorder %s22, 0
      %p111 = por %p109, %p110
      %p112 = scmp.ne.s32.totalorder %s98, %s99
      %p113 = scmp.eq.s32.totalorder %s23, 1
      %p114 = por %p112, %p113
      %p116 = scmp.ne.s32.totalorder %s99, %s115
      %p117 = scmp.eq.s32.totalorder %s23, 0
      %p118 = por %p116, %p117
      %p119 = scmp.le.s32.totalorder 1, %s17
      %p120 = scmp.lt.s32.totalorder %s17, 3
      %p121 = pnand %p119, %p120
      %p122 = pneg %p121
      // Predicated region
      $region9: #{tpu_custom_call.1} parent=5 // pred_check
        _
      $region10: #{tpu_custom_call.1} parent=5 // pred_check_branch
        %124 = sbr.rel (%p121) target = $region12
      $region11: #{tpu_custom_call.1} parent=5 // pred_region
        %s125 = ssub.s32 %s17, 1
      $region12: #{tpu_custom_call.1} parent=5 // pred_fallthru
        _
      %p126 = scmp.lt.s32.totalorder %s17, 2
      // Predicated region
      $region13: #{tpu_custom_call.1} parent=5 // pred_check
        %p127 = pneg %p126
      $region14: #{tpu_custom_call.1} parent=5 // pred_check_branch
        %129 = sbr.rel (%p127) target = $region16
      $region15: #{tpu_custom_call.1} parent=5 // pred_region
        // Predicated region
        $region17: #{tpu_custom_call.1} parent=15 // pred_check
          %p130 = pneg %p51
        $region18: #{tpu_custom_call.1} parent=15 // pred_check_branch
          %132 = sbr.rel (%p130) target = $region20
        $region19: #{tpu_custom_call.1} parent=15 // pred_region
          %s133 = sand.u32 %s41, 1
          %s134 = scalar_lea.sflag [#allocation6], %s133
          %s135 = sand.u32 %s41, 1
          %s136 = smul.addr %s135, 8
          %s137 = scalar_lea.vmem [#allocation5], %s136
          %s138 = sadd.s32 %s24, %s25
          %s140 = ssub.s32 128, 128
          %141 = vsyncadd %s134, %s140
          %s142 = smul.addr %s138, 128
          %s143 = scalar_lea.hbm %s0, %s142
          %s145 = sshll.u32 %s137, 4
          %s146 = int_to_ptr.vmem [resolvable:$true] %s145
          %148 = dma.hbm_to_vmem [thread:$0]  %s143, 128, %s146, %s134
        $region20: #{tpu_custom_call.1} parent=15 // pred_fallthru
          _
        // Predicated region
        $region21: #{tpu_custom_call.1} parent=15 // pred_check
          %p149 = pneg %p79
        $region22: #{tpu_custom_call.1} parent=15 // pred_check_branch
          %151 = sbr.rel (%p149) target = $region24
        $region23: #{tpu_custom_call.1} parent=15 // pred_region
          %s152 = sand.u32 %s69, 1
          %s153 = scalar_lea.sflag [#allocation9], %s152
          %s154 = sand.u32 %s69, 1
          %s155 = smul.addr %s154, 8
          %s156 = scalar_lea.vmem [#allocation8], %s155
          %s157 = sadd.s32 %s24, %s25
          %s159 = ssub.s32 128, 128
          %160 = vsyncadd %s153, %s159
          %s161 = smul.addr %s157, 128
          %s162 = scalar_lea.hbm %s1, %s161
          %s164 = sshll.u32 %s156, 4
          %s165 = int_to_ptr.vmem [resolvable:$true] %s164
          %167 = dma.hbm_to_vmem [thread:$0]  %s162, 128, %s165, %s153
        $region24: #{tpu_custom_call.1} parent=15 // pred_fallthru
          _
      $region16: #{tpu_custom_call.1} parent=5 // pred_fallthru
        _
      %p168 = scmp.le.s32.totalorder 1, %s17
      %p169 = scmp.lt.s32.totalorder %s17, 3
      %p170 = pnand %p168, %p169
      %p171 = pneg %p170
      // Predicated region
      $region25: #{tpu_custom_call.1} parent=5 // pred_check
        _
      $region26: #{tpu_custom_call.1} parent=5 // pred_check_branch
        %173 = sbr.rel (%p170) target = $region28
      $region27: #{tpu_custom_call.1} parent=5 // pred_region
        %s174 = ssub.s32 %s17, 1
        %s175 = sand.u32 %s44, 1
        %s176 = scalar_lea.sflag [#allocation6], %s175
        %s177 = sand.u32 %s44, 1
        %s178 = smul.addr %s177, 8
        %s179 = scalar_lea.vmem [#allocation5], %s178
        // Predicated region
        $region29: #{tpu_custom_call.1} parent=27 // pred_check
          %p180 = pneg %p57
        $region30: #{tpu_custom_call.1} parent=27 // pred_check_branch
          %182 = sbr.rel (%p180) target = $region32
        $region31: #{tpu_custom_call.1} parent=27 // pred_region
          %183 = dma.done %s176, 128
        $region32: #{tpu_custom_call.1} parent=27 // pred_fallthru
          _
        %s184 = sand.u32 %s72, 1
        %s185 = scalar_lea.sflag [#allocation9], %s184
        %s186 = sand.u32 %s72, 1
        %s187 = smul.addr %s186, 8
        %s188 = scalar_lea.vmem [#allocation8], %s187
        // Predicated region
        $region33: #{tpu_custom_call.1} parent=27 // pred_check
          %p189 = pneg %p85
        $region34: #{tpu_custom_call.1} parent=27 // pred_check_branch
          %191 = sbr.rel (%p189) target = $region36
        $region35: #{tpu_custom_call.1} parent=27 // pred_region
          %192 = dma.done %s185, 128
        $region36: #{tpu_custom_call.1} parent=27 // pred_fallthru
          _
        %s193 = sand.u32 %s44, 1
        %s194 = scalar_lea.sflag [#allocation6], %s193
        %s195 = sand.u32 %s44, 1
        %s196 = smul.addr %s195, 8
        %s197 = scalar_lea.vmem [#allocation5], %s196
        %p198 = pneg %p57
        %p199 = pneg %p54
        %s200 = sand.u32 %s72, 1
        %s201 = scalar_lea.sflag [#allocation9], %s200
        %s202 = sand.u32 %s72, 1
        %s203 = smul.addr %s202, 8
        %s204 = scalar_lea.vmem [#allocation8], %s203
        %p205 = pneg %p85
        %p206 = pneg %p82
        %p207 = pneg %p111
        %p208 = pneg %p108
        %s209 = sand.u32 %s98, 1
        %s210 = scalar_lea.sflag [#allocation7], %s209
        %s211 = sand.u32 %s98, 1
        %s212 = smul.addr %s211, 24
        %s213 = scalar_lea.vmem [#allocation10], %s212
        %s214 = sadd.s32 %s26, %s27
        %s215 = sadd.s32 %s26, %s27
        %p216 = scmp.eq.s32.totalorder %s27, 0
        // Predicated region
        $region37: #{tpu_custom_call.1} parent=27 // pred_check
          %p217 = pneg %p216
        $region38: #{tpu_custom_call.1} parent=27 // pred_check_branch
          %219 = sbr.rel (%p217) target = $region40
        $region39: #{tpu_custom_call.1} parent=27 // pred_region
          %220 = vst [vmem:[#allocation2] sm:$0xff] 0.0
          %221 = vst [vmem:[#allocation3] sm:$0xff] 0.0
          %222 = vst [vmem:[#allocation4] sm:$0xff] 0.0
        $region40: #{tpu_custom_call.1} parent=27 // pred_fallthru
          _
        %v223 = vld [vmem:[%s179] sm:$0xff]
        %v224 = vld [vmem:[%s188] sm:$0xff]
        %vm225 = vcmp.eq.f32.partialorder %v224, 1.0
        %v226 = vsel %vm225, 1, 0
        %v227 = vcvt.s32.f32 %v226
        %vm228 = vcmp.lt.f32.partialorder %v224, 1.0
        %v229 = vsel %vm228, 1, 0
        %v230 = vcvt.s32.f32 %v229
        %v231 = vsub.f32 1.0, %v224
        %v232 = vmul.f32 %v231, %v231
        %v233 = vmul.f32 %v232, %v232
        %v234 = vsub.f32 1.0, %v223
        %v235 = vlog2.pop %v223
        %v236 = vmul.f32 %v235, 0.6931472
        %v237 = vmul.f32 %v234, %v234
        %v238 = vmul.f32 %v236, %v237
        %v239 = vmul.f32 %v238, %v227
        %v240 = vlog2.pop %v234
        %v241 = vmul.f32 %v240, 0.6931472
        %v242 = vmul.f32 %v223, %v223
        %v243 = vmul.f32 %v241, %v242
        %v244 = vmul.f32 %v243, %v233
        %v245 = vmul.f32 %v244, %v230
        %v246 = vld [vmem:[#allocation2] sm:$0xff]
        %v247 = vadd.f32 %v239, 0.0
        %v248 = vadd.f32 %v246, %v247
        %249 = vst [vmem:[#allocation2] sm:$0xff] %v248
        %v250 = vld [vmem:[#allocation3] sm:$0xff]
        %v251 = vadd.f32 %v245, 0.0
        %v252 = vadd.f32 %v250, %v251
        %253 = vst [vmem:[#allocation3] sm:$0xff] %v252
        %v254 = vld [vmem:[#allocation4] sm:$0xff]
        %v255 = vadd.f32 %v227, 0.0
        %v256 = vadd.f32 %v254, %v255
        %257 = vst [vmem:[#allocation4] sm:$0xff] %v256
        // Predicated region
        $region41: #{tpu_custom_call.1} parent=27 // pred_check
          %p258 = pneg %p216
        $region42: #{tpu_custom_call.1} parent=27 // pred_check_branch
          %260 = sbr.rel (%p258) target = $region44
        $region43: #{tpu_custom_call.1} parent=27 // pred_region
          %v261 = vld [vmem:[#allocation2] sm:$0xff]
          %262 = vst [vmem:[%s213] sm:$0xff] %v261
          %v263 = vld [vmem:[#allocation3] sm:$0xff]
          %264 = vst [vmem:[%s213 + $0x8] sm:$0xff] %v263
          %v265 = vld [vmem:[#allocation4] sm:$0xff]
          %266 = vst [vmem:[%s213 + $0x10] sm:$0xff] %v265
        $region44: #{tpu_custom_call.1} parent=27 // pred_fallthru
          _
        %s267 = sand.u32 %s98, 1
        %s268 = scalar_lea.sflag [#allocation7], %s267
        %s269 = sand.u32 %s98, 1
        %s270 = smul.addr %s269, 24
        %s271 = scalar_lea.vmem [#allocation10], %s270
        // Predicated region
        $region45: #{tpu_custom_call.1} parent=27 // pred_check
          %p272 = pneg %p108
        $region46: #{tpu_custom_call.1} parent=27 // pred_check_branch
          %274 = sbr.rel (%p272) target = $region48
        $region47: #{tpu_custom_call.1} parent=27 // pred_region
          %s276 = ssub.s32 384, 384
          %277 = vsyncadd %s268, %s276
          %s278 = smul.addr %s26, 3
          %s279 = smul.addr %s278, 128
          %s280 = scalar_lea.hbm %s2, %s279
          %s281 = sshll.u32 %s271, 4
          %s282 = int_to_ptr.vmem [resolvable:$true] %s281
          %287 = dma.vmem_to_hbm [thread:$0]  %s282, 384, %s280, %s268, 128, 128, 8
        $region48: #{tpu_custom_call.1} parent=27 // pred_fallthru
          _
      $region28: #{tpu_custom_call.1} parent=5 // pred_fallthru
        _
      %p288 = scmp.le.s32.totalorder 2, %s17
      // Predicated region
      $region49: #{tpu_custom_call.1} parent=5 // pred_check
        %p289 = pneg %p288
      $region50: #{tpu_custom_call.1} parent=5 // pred_check_branch
        %291 = sbr.rel (%p289) target = $region52
      $region51: #{tpu_custom_call.1} parent=5 // pred_region
        %s292 = ssub.s32 %s17, 2
        // Predicated region
        $region53: #{tpu_custom_call.1} parent=51 // pred_check
          %p293 = pneg %p114
        $region54: #{tpu_custom_call.1} parent=51 // pred_check_branch
          %295 = sbr.rel (%p293) target = $region56
        $region55: #{tpu_custom_call.1} parent=51 // pred_region
          %s296 = sand.u32 %s99, 1
          %s297 = scalar_lea.sflag [#allocation7], %s296
          %s298 = sand.u32 %s99, 1
          %s299 = smul.addr %s298, 24
          %s300 = scalar_lea.vmem [#allocation10], %s299
          %301 = dma.done %s297, 384
        $region56: #{tpu_custom_call.1} parent=51 // pred_fallthru
          _
      $region52: #{tpu_custom_call.1} parent=5 // pred_fallthru
        _
    $region6: #{tpu_custom_call.1} parent=1 // loop_footer
      %s21 = sadd.s32 1, %s17
    $region7: #{tpu_custom_call.1} parent=1 // loop_footer_branch
      %16 = sbr.rel target = $region3
    $region8: #{tpu_custom_call.1} parent=1 // loop_exit
      _
    %302 = vsyncpa [#allocation6], 1
    %s303 = scalar_lea.sflag [#allocation6], 1
    %304 = vsyncpa %s303, 1
    %305 = vsyncpa [#allocation9], 1
    %s306 = scalar_lea.sflag [#allocation9], 1
    %307 = vsyncpa %s306, 1
    %308 = vsyncpa [#allocation7], 1
    %s309 = scalar_lea.sflag [#allocation7], 1
    %310 = vsyncpa %s309, 1

</llo_original>
